<compile_context>
chip_gen: v6e
topology: v6e:2x2x1
jax: 0.10.0
libtpu: 0.0.40
codegen_flags: <defaults>
</compile_context>

<pallas_src>
import functools

import jax
import jax.numpy as jnp
from jax.experimental import pallas as pl
from jax.experimental.pallas import tpu as pltpu


def _proto_loss_kernel(qry_ref, prot_ref, tgt_ref, loss_ref, corr_ref, *,
                       n_way, total_n):
    # qry_ref : (TN, D)         queries for this tile (native dtype, bf16 OK)
    # prot_ref: (TN, n_way*D)   this tile's own prototype rows, class-major
    # tgt_ref : (TN, 1) int32   target class per query
    # loss_ref, corr_ref: (1, 1) SMEM partial sums for this tile
    tn, d = qry_ref.shape

    qf = qry_ref[...].astype(jnp.float32)            # (TN, D)
    prot = prot_ref[...]                             # (TN, n_way*D)
    tgt = tgt_ref[...]                               # (TN, 1) int32

    # Per-class squared distance; D-contraction on the MXU.  sel_c is a
    # (D, n_way) one-hot column selector so each matmul drops its result
    # straight into column c of the (TN, n_way) distance block.  The n_way-
    # fold MXU redundancy (tn*D*n_way^2 MACs total) is negligible next to the
    # prompt_emb DMA; diff^2 keeps full f32 conditioning for bf16 inputs.
    sel_lane = jax.lax.broadcasted_iota(jnp.int32, (d, n_way), 1)
    dists = jnp.zeros((tn, n_way), dtype=jnp.float32)
    for c in range(n_way):                           # n_way is small & static
        pc = prot[:, c * d:(c + 1) * d].astype(jnp.float32)
        diff = qf - pc
        sel_c = (sel_lane == c).astype(jnp.float32)  # ones only in column c
        dists = dists + jax.lax.dot_general(
            diff * diff, sel_c, (((1,), (0,)), ((), ())),
            preferred_element_type=jnp.float32)      # (TN, n_way)

    lane = jax.lax.broadcasted_iota(jnp.int32, (tn, n_way), 1)   # (TN, n_way)
    row = jax.lax.broadcasted_iota(jnp.int32, (tn, 1), 0)        # (TN, 1)

    # per-row loss = dist[target] + logsumexp(-dist), stabilized with min(dist)
    mn = jnp.min(dists, axis=1, keepdims=True)                       # (TN, 1)
    ssum = jnp.sum(jnp.exp(mn - dists), axis=1, keepdims=True)       # (TN, 1)
    picked = jnp.sum(jnp.where(lane == tgt, dists, 0.0),
                     axis=1, keepdims=True)                          # (TN, 1)
    loss_rows = (picked - mn) + jnp.log(ssum)

    # y_hat = argmax of log_probs = first argmin of dists (torch tie rule).
    y_col = jnp.min(jnp.where(dists == mn, lane, jnp.int32(2 ** 30)),
                    axis=1, keepdims=True)
    correct = y_col == tgt

    # Mask tile rows past the true N (the tail tile reads OOB garbage).
    valid = (row + pl.program_id(0) * tn) < total_n

    loss_ref[0, 0] = jnp.sum(jnp.where(valid, loss_rows, 0.0))
    corr_ref[0, 0] = jnp.sum(jnp.where(valid & correct, 1.0, 0.0))


@functools.partial(jax.jit, static_argnames=("n_way", "block_rows"))
def prototypical_loss(qry_emb, prompt_emb, bin_labels, *, n_way, block_rows=256):
    """Pallas TPU implementation of PrototypicalLoss.forward -> (loss, acc)."""
    # TODO(synk): the reference forward() print()s qry_emb / prompt_emb; debug
    # prints are intentionally omitted from the kernel.
    n, d = qry_emb.shape
    m, d2 = prompt_emb.shape
    if d != d2:
        raise Exception("embedding dims of qry_emb and prompt_emb differ")
    assert m == n * n_way, "expected prompt_emb rows == N * n_way"

    # int32 target column (== torch.argmax(bin_labels, dim=-1)); avoids
    # streaming the one-hot matrix through the kernel.
    tgt = jnp.argmax(bin_labels.reshape(n, n_way), axis=1)
    tgt = tgt.astype(jnp.int32).reshape(n, 1)

    # Row-major reshape (free): the n_way prototype rows of query i become one
    # row of n_way*D lanes, so each grid step streams exactly its own protos.
    prompt_rows = prompt_emb.reshape(n, n_way * d)

    q_item = jnp.dtype(qry_emb.dtype).itemsize
    p_item = jnp.dtype(prompt_emb.dtype).itemsize

    # Per-generation VMEM budget (v5e/v6e 128 MiB, v7x 64 MiB physical); use a
    # conservative slice for tiling and tell Mosaic the scoped limit.
    try:
        vmem_phys = int(pltpu.get_tpu_info().vmem_capacity_bytes)
    except Exception:  # interpret mode / unknown chip -> most conservative gen
        vmem_phys = 64 * 1024 * 1024
    vmem_phys = max(vmem_phys, 32 * 1024 * 1024)
    vmem_budget = vmem_phys // 4

    # Per-row bytes: double-buffered input blocks + in-kernel f32 temporaries
    # (qf, one live diff/diff^2 pair, the (TN, n_way) block, reduction cols).
    in_row = 2 * (d * q_item + n_way * d * p_item + 4)
    tmp_row = (4 * d + 8 * n_way + 64) * 4
    per_row = in_row + tmp_row

    tn = max(8, min(block_rows, (vmem_budget // per_row) // 8 * 8))
    # Give v7x's two TensorCores at least two "parallel" tiles when N permits.
    if n > 8:
        tn = min(tn, max(8, pl.cdiv(pl.cdiv(n, 2), 8) * 8))
    if n <= tn:
        tn = n
    num_tiles = pl.cdiv(n, tn)

    kernel = functools.partial(_proto_loss_kernel, n_way=n_way, total_n=n)

    grid_spec = pltpu.PrefetchScalarGridSpec(
        num_scalar_prefetch=0,
        grid=(num_tiles,),
        in_specs=[
            pl.BlockSpec((tn, d), lambda i: (i, 0)),            # queries
            # TODO(synk): add pipeline_mode=pl.Buffered(3) on this spec if an
            # xprof trace shows the prompt_emb DMA exposed at tile boundaries.
            pl.BlockSpec((tn, n_way * d), lambda i: (i, 0)),    # own prototypes
            pl.BlockSpec((tn, 1), lambda i: (i, 0)),            # int32 targets
        ],
        out_specs=(
            pl.BlockSpec((1, 1), lambda i: (i, 0),
                         memory_space=pltpu.MemorySpace.SMEM),
            pl.BlockSpec((1, 1), lambda i: (i, 0),
                         memory_space=pltpu.MemorySpace.SMEM),
        ),
    )

    loss_parts, corr_parts = pl.pallas_call(
        kernel,
        out_shape=(
            jax.ShapeDtypeStruct((num_tiles, 1), jnp.float32),
            jax.ShapeDtypeStruct((num_tiles, 1), jnp.float32),
        ),
        grid_spec=grid_spec,
        compiler_params=pltpu.CompilerParams(
            dimension_semantics=("parallel",),   # independent tiles -> megacore
            vmem_limit_bytes=vmem_phys // 2),
    )(qry_emb, prompt_rows, tgt)

    # Tiny final reduction in plain JAX (keeps the grid axis fully parallel).
    loss = jnp.sum(loss_parts) / jnp.float32(n)
    acc = jnp.sum(corr_parts) / jnp.float32(n)
    return loss, acc


def _reference(qry_emb, prompt_emb, bin_labels, n_way):
    """Pure-JAX replica of the PyTorch forward (for validation)."""
    n, d = qry_emb.shape
    prot = prompt_emb.reshape(n, n_way, d).astype(jnp.float32)
    diff = qry_emb.astype(jnp.float32)[:, None, :] - prot
    dists = jnp.sum(diff * diff, axis=-1)          # == the sliced/stacked dists
    log_probs = jax.nn.log_softmax(-dists, axis=1)
    lbl = bin_labels.reshape(n, n_way).astype(jnp.float32)
    loss = -jnp.sum(log_probs * lbl) / n
    y_hat = jnp.argmax(log_probs, axis=1)
    acc = jnp.mean((y_hat == jnp.argmax(lbl, axis=1)).astype(jnp.float32))
    return loss, acc


if __name__ == "__main__":
    def run_case(n, n_way, d, key):
        k_q, k_p, k_l = jax.random.split(key, 3)
        qry = jax.random.normal(k_q, (n, d), dtype=jnp.float32)
        prompt = jax.random.normal(k_p, (n * n_way, d), dtype=jnp.float32)
        targets = jax.random.randint(k_l, (n,), 0, n_way)
        bin_labels = jax.nn.one_hot(targets, n_way, dtype=jnp.float32)

        loss, acc = prototypical_loss(qry, prompt, bin_labels, n_way=n_way)
        jax.block_until_ready((loss, acc))

        ref_loss, ref_acc = _reference(qry, prompt, bin_labels, n_way)
        assert jnp.allclose(loss, ref_loss, rtol=1e-3, atol=1e-3), (n, loss, ref_loss)
        assert jnp.allclose(acc, ref_acc, atol=1e-6), (n, acc, ref_acc)

    key = jax.random.PRNGKey(0)
    k1, k2 = jax.random.split(key)
    run_case(4, 5, 64, k1)      # episode-sized: single tile, full-array blocks
    run_case(300, 5, 128, k2)   # multi-tile grid, tail-row masking, >=2 tiles
    print("KERNEL_OK")
</pallas_src>

<mosaic_0001>
module attributes {stable_mosaic.version = 11 : i64} {
  func.func @_proto_loss_kernel(%arg0: i32, %arg1: memref<4x64xf32, #tpu.memory_space<vmem>>, %arg2: memref<4x320xf32, #tpu.memory_space<vmem>>, %arg3: memref<4x1xi32, #tpu.memory_space<vmem>>, %arg4: memref<1x1xf32, #tpu.memory_space<smem>>, %arg5: memref<1x1xf32, #tpu.memory_space<smem>>) attributes {dimension_semantics = [#tpu.dimension_semantics<parallel>], iteration_bounds = array<i64: 1>, scalar_prefetch = 0 : i64, scratch_operands = 0 : i64, tpu.core_type = #tpu.core_type<tc>, window_params = [{transform_indices = @transform_0, window_bounds = array<i64: 4, 64>}, {transform_indices = @transform_1, window_bounds = array<i64: 4, 320>}, {transform_indices = @transform_2, window_bounds = array<i64: 4, 1>}, {transform_indices = @transform_3, window_bounds = array<i64: 1, 1>}, {transform_indices = @transform_4, window_bounds = array<i64: 1, 1>}]} {
    %c0 = arith.constant 0 : index
    %c0_0 = arith.constant 0 : index
    %0 = vector.load %arg1[%c0, %c0_0] : memref<4x64xf32, #tpu.memory_space<vmem>>, vector<4x64xf32>
    %c0_1 = arith.constant 0 : index
    %c0_2 = arith.constant 0 : index
    %1 = vector.load %arg2[%c0_1, %c0_2] : memref<4x320xf32, #tpu.memory_space<vmem>>, vector<4x320xf32>
    %c0_3 = arith.constant 0 : index
    %c0_4 = arith.constant 0 : index
    %2 = vector.load %arg3[%c0_3, %c0_4] : memref<4x1xi32, #tpu.memory_space<vmem>>, vector<4x1xi32>
    %3 = tpu.iota {dimensions = array<i32: 1>} : vector<64x5xi32>
    %cst = arith.constant 0.000000e+00 : f32
    %4 = vector.broadcast %cst : f32 to vector<4x5xf32>
    %5 = vector.extract_strided_slice %1 {offsets = [0, 0], sizes = [4, 64], strides = [1, 1]} : vector<4x320xf32> to vector<4x64xf32>
    %6 = arith.subf %0, %5 : vector<4x64xf32>
    %c0_i32 = arith.constant 0 : i32
    %7 = vector.broadcast %c0_i32 : i32 to vector<64x5xi32>
    %8 = arith.cmpi eq, %3, %7 : vector<64x5xi32>
    %9 = arith.extui %8 : vector<64x5xi1> to vector<64x5xi32>
    %10 = arith.sitofp %9 : vector<64x5xi32> to vector<64x5xf32>
    %11 = arith.mulf %6, %6 : vector<4x64xf32>
    %cst_5 = arith.constant dense<0.000000e+00> : vector<4x5xf32>
    %12 = tpu.matmul %11, %10, %cst_5 {dimension_numbers = #tpu.dot_dimension_numbers<[1], [0], [0], [1], [0, 0, 1, 1], [], []>} : vector<4x64xf32>, vector<64x5xf32>, vector<4x5xf32> -> vector<4x5xf32>
    %13 = arith.addf %4, %12 : vector<4x5xf32>
    %14 = vector.extract_strided_slice %1 {offsets = [0, 64], sizes = [4, 64], strides = [1, 1]} : vector<4x320xf32> to vector<4x64xf32>
    %15 = arith.subf %0, %14 : vector<4x64xf32>
    %c1_i32 = arith.constant 1 : i32
    %16 = vector.broadcast %c1_i32 : i32 to vector<64x5xi32>
    %17 = arith.cmpi eq, %3, %16 : vector<64x5xi32>
    %18 = arith.extui %17 : vector<64x5xi1> to vector<64x5xi32>
    %19 = arith.sitofp %18 : vector<64x5xi32> to vector<64x5xf32>
    %20 = arith.mulf %15, %15 : vector<4x64xf32>
    %cst_6 = arith.constant dense<0.000000e+00> : vector<4x5xf32>
    %21 = tpu.matmul %20, %19, %cst_6 {dimension_numbers = #tpu.dot_dimension_numbers<[1], [0], [0], [1], [0, 0, 1, 1], [], []>} : vector<4x64xf32>, vector<64x5xf32>, vector<4x5xf32> -> vector<4x5xf32>
    %22 = arith.addf %13, %21 : vector<4x5xf32>
    %23 = vector.extract_strided_slice %1 {offsets = [0, 128], sizes = [4, 64], strides = [1, 1]} : vector<4x320xf32> to vector<4x64xf32>
    %24 = arith.subf %0, %23 : vector<4x64xf32>
    %c2_i32 = arith.constant 2 : i32
    %25 = vector.broadcast %c2_i32 : i32 to vector<64x5xi32>
    %26 = arith.cmpi eq, %3, %25 : vector<64x5xi32>
    %27 = arith.extui %26 : vector<64x5xi1> to vector<64x5xi32>
    %28 = arith.sitofp %27 : vector<64x5xi32> to vector<64x5xf32>
    %29 = arith.mulf %24, %24 : vector<4x64xf32>
    %cst_7 = arith.constant dense<0.000000e+00> : vector<4x5xf32>
    %30 = tpu.matmul %29, %28, %cst_7 {dimension_numbers = #tpu.dot_dimension_numbers<[1], [0], [0], [1], [0, 0, 1, 1], [], []>} : vector<4x64xf32>, vector<64x5xf32>, vector<4x5xf32> -> vector<4x5xf32>
    %31 = arith.addf %22, %30 : vector<4x5xf32>
    %32 = vector.extract_strided_slice %1 {offsets = [0, 192], sizes = [4, 64], strides = [1, 1]} : vector<4x320xf32> to vector<4x64xf32>
    %33 = arith.subf %0, %32 : vector<4x64xf32>
    %c3_i32 = arith.constant 3 : i32
    %34 = vector.broadcast %c3_i32 : i32 to vector<64x5xi32>
    %35 = arith.cmpi eq, %3, %34 : vector<64x5xi32>
    %36 = arith.extui %35 : vector<64x5xi1> to vector<64x5xi32>
    %37 = arith.sitofp %36 : vector<64x5xi32> to vector<64x5xf32>
    %38 = arith.mulf %33, %33 : vector<4x64xf32>
    %cst_8 = arith.constant dense<0.000000e+00> : vector<4x5xf32>
    %39 = tpu.matmul %38, %37, %cst_8 {dimension_numbers = #tpu.dot_dimension_numbers<[1], [0], [0], [1], [0, 0, 1, 1], [], []>} : vector<4x64xf32>, vector<64x5xf32>, vector<4x5xf32> -> vector<4x5xf32>
    %40 = arith.addf %31, %39 : vector<4x5xf32>
    %41 = vector.extract_strided_slice %1 {offsets = [0, 256], sizes = [4, 64], strides = [1, 1]} : vector<4x320xf32> to vector<4x64xf32>
    %42 = arith.subf %0, %41 : vector<4x64xf32>
    %c4_i32 = arith.constant 4 : i32
    %43 = vector.broadcast %c4_i32 : i32 to vector<64x5xi32>
    %44 = arith.cmpi eq, %3, %43 : vector<64x5xi32>
    %45 = arith.extui %44 : vector<64x5xi1> to vector<64x5xi32>
    %46 = arith.sitofp %45 : vector<64x5xi32> to vector<64x5xf32>
    %47 = arith.mulf %42, %42 : vector<4x64xf32>
    %cst_9 = arith.constant dense<0.000000e+00> : vector<4x5xf32>
    %48 = tpu.matmul %47, %46, %cst_9 {dimension_numbers = #tpu.dot_dimension_numbers<[1], [0], [0], [1], [0, 0, 1, 1], [], []>} : vector<4x64xf32>, vector<64x5xf32>, vector<4x5xf32> -> vector<4x5xf32>
    %49 = arith.addf %40, %48 : vector<4x5xf32>
    %50 = tpu.iota {dimensions = array<i32: 1>} : vector<4x5xi32>
    %51 = tpu.iota {dimensions = array<i32: 0>} : vector<4x1xi32>
    %cst_10 = arith.constant dense<0x7F800000> : vector<4xf32>
    %52 = vector.multi_reduction <minimumf>, %49, %cst_10 [1] : vector<4x5xf32> to vector<4xf32>
    %53 = vector.shape_cast %52 : vector<4xf32> to vector<4x1xf32>
    %54 = vector.broadcast %53 : vector<4x1xf32> to vector<4x5xf32>
    %55 = arith.subf %54, %49 : vector<4x5xf32>
    %56 = math.exp %55 : vector<4x5xf32>
    %cst_11 = arith.constant dense<0.000000e+00> : vector<4xf32>
    %57 = vector.multi_reduction <add>, %56, %cst_11 [1] : vector<4x5xf32> to vector<4xf32>
    %58 = vector.shape_cast %57 : vector<4xf32> to vector<4x1xf32>
    %59 = vector.broadcast %2 : vector<4x1xi32> to vector<4x5xi32>
    %60 = arith.cmpi eq, %50, %59 : vector<4x5xi32>
    %cst_12 = arith.constant 0.000000e+00 : f32
    %61 = vector.broadcast %cst_12 : f32 to vector<4x5xf32>
    %62 = arith.select %60, %49, %61 : vector<4x5xi1>, vector<4x5xf32>
    %cst_13 = arith.constant dense<0.000000e+00> : vector<4xf32>
    %63 = vector.multi_reduction <add>, %62, %cst_13 [1] : vector<4x5xf32> to vector<4xf32>
    %64 = vector.shape_cast %63 : vector<4xf32> to vector<4x1xf32>
    %65 = arith.subf %64, %53 : vector<4x1xf32>
    %66 = math.log %58 : vector<4x1xf32>
    %67 = arith.addf %65, %66 : vector<4x1xf32>
    %68 = vector.broadcast %53 : vector<4x1xf32> to vector<4x5xf32>
    %69 = arith.cmpf oeq, %49, %68 : vector<4x5xf32>
    %c1073741824_i32 = arith.constant 1073741824 : i32
    %70 = vector.broadcast %c1073741824_i32 : i32 to vector<4x5xi32>
    %71 = arith.select %69, %50, %70 : vector<4x5xi1>, vector<4x5xi32>
    %cst_14 = arith.constant dense<2147483647> : vector<4xi32>
    %72 = vector.multi_reduction <minsi>, %71, %cst_14 [1] : vector<4x5xi32> to vector<4xi32>
    %73 = vector.shape_cast %72 : vector<4xi32> to vector<4x1xi32>
    %74 = arith.cmpi eq, %73, %2 : vector<4x1xi32>
    %c4_i32_15 = arith.constant 4 : i32
    %75 = arith.muli %arg0, %c4_i32_15 : i32
    %76 = vector.broadcast %75 : i32 to vector<4x1xi32>
    %77 = arith.addi %51, %76 : vector<4x1xi32>
    %c4_i32_16 = arith.constant 4 : i32
    %78 = vector.broadcast %c4_i32_16 : i32 to vector<4x1xi32>
    %79 = arith.cmpi slt, %77, %78 : vector<4x1xi32>
    %cst_17 = arith.constant 0.000000e+00 : f32
    %80 = vector.broadcast %cst_17 : f32 to vector<4x1xf32>
    %81 = arith.select %79, %67, %80 : vector<4x1xi1>, vector<4x1xf32>
    %82 = vector.shape_cast %81 : vector<4x1xf32> to vector<1x4x1xf32>
    %cst_18 = arith.constant dense<0.000000e+00> : vector<1xf32>
    %83 = vector.multi_reduction <add>, %82, %cst_18 [1, 2] : vector<1x4x1xf32> to vector<1xf32>
    %84 = vector.shape_cast %83 : vector<1xf32> to vector<1x1x1xf32>
    %85 = vector.extract %84[0, 0, 0] : f32 from vector<1x1x1xf32>
    %c0_19 = arith.constant 0 : index
    %c0_20 = arith.constant 0 : index
    %86 = memref.load %arg4[%c0_19, %c0_20] : memref<1x1xf32, #tpu.memory_space<smem>>
    memref.store %85, %arg4[%c0_19, %c0_20] : memref<1x1xf32, #tpu.memory_space<smem>>
    %87 = arith.andi %79, %74 : vector<4x1xi1>
    %cst_21 = arith.constant 1.000000e+00 : f32
    %cst_22 = arith.constant 0.000000e+00 : f32
    %88 = vector.broadcast %cst_21 : f32 to vector<4x1xf32>
    %89 = vector.broadcast %cst_22 : f32 to vector<4x1xf32>
    %90 = arith.select %87, %88, %89 : vector<4x1xi1>, vector<4x1xf32>
    %91 = vector.shape_cast %90 : vector<4x1xf32> to vector<1x4x1xf32>
    %cst_23 = arith.constant dense<0.000000e+00> : vector<1xf32>
    %92 = vector.multi_reduction <add>, %91, %cst_23 [1, 2] : vector<1x4x1xf32> to vector<1xf32>
    %93 = vector.shape_cast %92 : vector<1xf32> to vector<1x1x1xf32>
    %94 = vector.extract %93[0, 0, 0] : f32 from vector<1x1x1xf32>
    %c0_24 = arith.constant 0 : index
    %c0_25 = arith.constant 0 : index
    %95 = memref.load %arg5[%c0_24, %c0_25] : memref<1x1xf32, #tpu.memory_space<smem>>
    memref.store %94, %arg5[%c0_24, %c0_25] : memref<1x1xf32, #tpu.memory_space<smem>>
    return
  }
  func.func @transform_0(%arg0: i32) -> (i32, i32) {
    %c0_i32 = arith.constant 0 : i32
    %c0_i32_0 = arith.constant 0 : i32
    return %arg0, %c0_i32 : i32, i32
  }
  func.func @transform_1(%arg0: i32) -> (i32, i32) {
    %c0_i32 = arith.constant 0 : i32
    %c0_i32_0 = arith.constant 0 : i32
    return %arg0, %c0_i32 : i32, i32
  }
  func.func @transform_2(%arg0: i32) -> (i32, i32) {
    %c0_i32 = arith.constant 0 : i32
    %c0_i32_0 = arith.constant 0 : i32
    return %arg0, %c0_i32 : i32, i32
  }
  func.func @transform_3(%arg0: i32) -> (i32, i32) {
    %c0_i32 = arith.constant 0 : i32
    %c0_i32_0 = arith.constant 0 : i32
    return %arg0, %c0_i32 : i32, i32
  }
  func.func @transform_4(%arg0: i32) -> (i32, i32) {
    %c0_i32 = arith.constant 0 : i32
    %c0_i32_0 = arith.constant 0 : i32
    return %arg0, %c0_i32 : i32, i32
  }
}

</mosaic_0001>

<llo_original>
// kernel: prototypical_loss.1
$region0: #{prototypical_loss.1}
  #allocation0 [shape = 'u32[]', space=smem, size = 0x4, offset = 0x4, fixed_abs, tag = 'smem constant byte address 0x4 - core index']
  #allocation1 [shape = 'u32[144,128]{1,0:T(1,128)}', space=vmem, size = 0x12000, scoped, tag = 'internal scratch']
  %s0 = inlined_call_operand.vmem [shape: f32[4,64], index: 0, kind: input, shape index: {}]
  %s1 = inlined_call_operand.vmem [shape: f32[4,320], index: 1, kind: input, shape index: {}]
  %s2 = inlined_call_operand.vmem [shape: s32[4,1], index: 2, kind: input, shape index: {}]
  %s3 = inlined_call_operand.hbm [shape: f32[1,1], index: 3, kind: output, shape index: {0}]
  %s4 = inlined_call_operand.hbm [shape: f32[1,1], index: 4, kind: output, shape index: {1}]
  %5 = xla_tuple %s3, %s4
  %s6 = sld [smem:[#allocation0]]
  $region30: #{prototypical_loss.1} parent=0
    _
  %s8 = ssub.s32 1, %s6
  %s9 = scalar_select 0, %s8, %s6
  $region1: #{prototypical_loss.1} parent=0
    #allocation2 [shape = 'u8[512]{0}', space=smem, size = 0x200, scoped, tag = 'output window, operand 0, single buffered']
    #allocation3 [shape = 's32[1]{0}', space=sflag, size = 0x4, scoped, tag = 'scoped memory for prototypical_loss.1']
    #allocation4 [shape = 'u8[512]{0}', space=smem, size = 0x200, scoped, tag = 'output window, operand 1, single buffered']
    #allocation5 [shape = 's32[1]{0}', space=sflag, size = 0x4, scoped, tag = 'scoped memory for prototypical_loss.1']
    %10 = vsyncpa [#allocation3], 0
    %11 = vsyncpa [#allocation5], 0
    // Predicated region
    $region2: #{prototypical_loss.1} parent=1 // pred_check
      _
    $region3: #{prototypical_loss.1} parent=1 // pred_check_branch
      %13 = sbr.rel (0) target = $region5
    $region4: #{prototypical_loss.1} parent=1 // pred_region
      _
    $region5: #{prototypical_loss.1} parent=1 // pred_fallthru
      _
    // Predicated region
    $region6: #{prototypical_loss.1} parent=1 // pred_check
      _
    $region7: #{prototypical_loss.1} parent=1 // pred_check_branch
      %15 = sbr.rel (0) target = $region9
    $region8: #{prototypical_loss.1} parent=1 // pred_region
      _
    $region9: #{prototypical_loss.1} parent=1 // pred_fallthru
      _
    // Predicated region
    $region10: #{prototypical_loss.1} parent=1 // pred_check
      _
    $region11: #{prototypical_loss.1} parent=1 // pred_check_branch
      %17 = sbr.rel (0) target = $region13
    $region12: #{prototypical_loss.1} parent=1 // pred_region
      _
    $region13: #{prototypical_loss.1} parent=1 // pred_fallthru
      _
    %v18 = vld [vmem:[%s0] sm:$0xf]
    %v19 = vld [vmem:[%s1] sm:$0xff]
    %v20 = vld [vmem:[%s1 + $0x8] sm:$0xf]
    %v21 = vld [vmem:[%s2] sm:$0xf]
    %v22 = vlaneseq
    %v23 = vand.u32 %v22, 127
    %v24 = vsub.f32 %v18, %v19
    %vm25 = vcmp.eq.s32.totalorder %v23, 0
    %v26 = vsel %vm25, 1, 0
    %v27 = vcvt.s32.f32 %v26
    %v28 = vmul.f32 %v24, %v24
    %30 = vrot.lane.b32.xlu0 %v19, 64
    %v31 = vpop.permute.xlu0 %30
    %v33 = vsub.f32 %v18, %v31
    %vm34 = vcmp.eq.s32.totalorder %v23, 1
    %v35 = vsel %vm34, 1, 0
    %v36 = vcvt.s32.f32 %v35
    %v37 = vmul.f32 %v33, %v33
    %vm38 = vcmask 523264
    %v40 = vsel %vm38, %v37, 0
    %42 = vmatprep.subr.mxu0 0.0
    %43 = vmatpush1.msra.mxu0 0.0
    %44 = vmatprep.subr.mxu0 0.0
    %45 = vmatpush1.msra.mxu0 0.0
    %46 = vmatprep.subr.mxu0 0.0
    %47 = vmatpush1.msra.mxu0 0.0
    %48 = vmatprep.subr.mxu0 0.0
    %49 = vmatpush1.msra.mxu0 0.0
    %50 = vmatprep.subr.mxu0 0.0
    %51 = vmatpush1.msra.mxu0 0.0
    %52 = vmatprep.subr.mxu0 0.0
    %53 = vmatpush1.msra.mxu0 0.0
    %54 = vmatprep.subr.mxu0 0.0
    %55 = vmatpush1.msra.mxu0 0.0
    %56 = vmatprep.subr.mxu0 0.0
    %57 = vmatpush1.msra.mxu0 0.0
    %58 = vmatprep.subr.mxu0 0.0
    %59 = vmatpush1.msra.mxu0 %v36
    %60 = vmatprep.subr.mxu0 0.0
    %61 = vmatpush1.msra.mxu0 %v36
    %62 = vmatprep.subr.mxu0 0.0
    %63 = vmatpush1.msra.mxu0 %v36
    %64 = vmatprep.subr.mxu0 0.0
    %65 = vmatpush1.msra.mxu0 %v36
    %66 = vmatprep.subr.mxu0 0.0
    %67 = vmatpush1.msra.mxu0 %v36
    %68 = vmatprep.subr.mxu0 0.0
    %69 = vmatpush1.msra.mxu0 %v36
    %70 = vmatprep.subr.mxu0 0.0
    %71 = vmatpush1.msra.mxu0 %v36
    %72 = vmatprep.subr.mxu0 0.0
    %73 = vmatpush1.msra.mxu0 %v36
    %74 = vmatprep.subr.mxu0 0.0
    %75 = vmatpush2.msra.mxu0 0.0
    %76 = vmatprep.subr.mxu0 0.0
    %77 = vmatpush2.msra.mxu0 0.0
    %78 = vmatprep.subr.mxu0 0.0
    %79 = vmatpush2.msra.mxu0 0.0
    %80 = vmatprep.subr.mxu0 0.0
    %81 = vmatpush2.msra.mxu0 0.0
    %82 = vmatprep.subr.mxu0 0.0
    %83 = vmatpush2.msra.mxu0 0.0
    %84 = vmatprep.subr.mxu0 0.0
    %85 = vmatpush2.msra.mxu0 0.0
    %86 = vmatprep.subr.mxu0 0.0
    %87 = vmatpush2.msra.mxu0 0.0
    %88 = vmatprep.subr.mxu0 0.0
    %89 = vmatpush2.msra.mxu0 0.0
    %90 = vmatprep.subr.mxu0 0.0
    %91 = vmatpush2.msra.mxu0 0.0
    %92 = vmatprep.subr.mxu0 0.0
    %93 = vmatpush2.msra.mxu0 0.0
    %94 = vmatprep.subr.mxu0 0.0
    %95 = vmatpush2.msra.mxu0 0.0
    %96 = vmatprep.subr.mxu0 0.0
    %97 = vmatpush2.msra.mxu0 0.0
    %98 = vmatprep.subr.mxu0 0.0
    %99 = vmatpush2.msra.mxu0 0.0
    %100 = vmatprep.subr.mxu0 0.0
    %101 = vmatpush2.msra.mxu0 0.0
    %102 = vmatprep.subr.mxu0 0.0
    %103 = vmatpush2.msra.mxu0 0.0
    %104 = vmatprep.subr.mxu0 0.0
    %105 = vmatpush2.msra.mxu0 0.0
    %106 = vmatprep.mubr.f32.mxu0 0.0
    %107 = vmatmul.mubr.f32.gmra.mxu0 %v40
    %v108 = vpop.f32.mrf.mxu0
    %v109 = vadd.f32 0.0, %v108
    %v110 = vpop.f32.mrf.mxu0
    %111 = vdwg.mxu0
    %v113 = vsel %vm38, %v28, 0
    %115 = vmatprep.subr.mxu0 0.0
    %116 = vmatpush1.msra.mxu0 0.0
    %117 = vmatprep.subr.mxu0 0.0
    %118 = vmatpush1.msra.mxu0 0.0
    %119 = vmatprep.subr.mxu0 0.0
    %120 = vmatpush1.msra.mxu0 0.0
    %121 = vmatprep.subr.mxu0 0.0
    %122 = vmatpush1.msra.mxu0 0.0
    %123 = vmatprep.subr.mxu0 0.0
    %124 = vmatpush1.msra.mxu0 0.0
    %125 = vmatprep.subr.mxu0 0.0
    %126 = vmatpush1.msra.mxu0 0.0
    %127 = vmatprep.subr.mxu0 0.0
    %128 = vmatpush1.msra.mxu0 0.0
    %129 = vmatprep.subr.mxu0 0.0
    %130 = vmatpush1.msra.mxu0 0.0
    %131 = vmatprep.subr.mxu0 0.0
    %132 = vmatpush1.msra.mxu0 %v27
    %133 = vmatprep.subr.mxu0 0.0
    %134 = vmatpush1.msra.mxu0 %v27
    %135 = vmatprep.subr.mxu0 0.0
    %136 = vmatpush1.msra.mxu0 %v27
    %137 = vmatprep.subr.mxu0 0.0
    %138 = vmatpush1.msra.mxu0 %v27
    %139 = vmatprep.subr.mxu0 0.0
    %140 = vmatpush1.msra.mxu0 %v27
    %141 = vmatprep.subr.mxu0 0.0
    %142 = vmatpush1.msra.mxu0 %v27
    %143 = vmatprep.subr.mxu0 0.0
    %144 = vmatpush1.msra.mxu0 %v27
    %145 = vmatprep.subr.mxu0 0.0
    %146 = vmatpush1.msra.mxu0 %v27
    %147 = vmatprep.subr.mxu0 0.0
    %148 = vmatpush2.msra.mxu0 0.0
    %149 = vmatprep.subr.mxu0 0.0
    %150 = vmatpush2.msra.mxu0 0.0
    %151 = vmatprep.subr.mxu0 0.0
    %152 = vmatpush2.msra.mxu0 0.0
    %153 = vmatprep.subr.mxu0 0.0
    %154 = vmatpush2.msra.mxu0 0.0
    %155 = vmatprep.subr.mxu0 0.0
    %156 = vmatpush2.msra.mxu0 0.0
    %157 = vmatprep.subr.mxu0 0.0
    %158 = vmatpush2.msra.mxu0 0.0
    %159 = vmatprep.subr.mxu0 0.0
    %160 = vmatpush2.msra.mxu0 0.0
    %161 = vmatprep.subr.mxu0 0.0
    %162 = vmatpush2.msra.mxu0 0.0
    %163 = vmatprep.subr.mxu0 0.0
    %164 = vmatpush2.msra.mxu0 0.0
    %165 = vmatprep.subr.mxu0 0.0
    %166 = vmatpush2.msra.mxu0 0.0
    %167 = vmatprep.subr.mxu0 0.0
    %168 = vmatpush2.msra.mxu0 0.0
    %169 = vmatprep.subr.mxu0 0.0
    %170 = vmatpush2.msra.mxu0 0.0
    %171 = vmatprep.subr.mxu0 0.0
    %172 = vmatpush2.msra.mxu0 0.0
    %173 = vmatprep.subr.mxu0 0.0
    %174 = vmatpush2.msra.mxu0 0.0
    %175 = vmatprep.subr.mxu0 0.0
    %176 = vmatpush2.msra.mxu0 0.0
    %177 = vmatprep.subr.mxu0 0.0
    %178 = vmatpush2.msra.mxu0 0.0
    %179 = vmatprep.mubr.f32.mxu0 0.0
    %180 = vmatmul.mubr.f32.gmra.mxu0 %v113
    %v181 = vpop.f32.mrf.mxu0
    %v182 = vadd.f32 %v109, %v181
    %v183 = vpop.f32.mrf.mxu0
    %184 = vdwg.mxu0
    %v185 = vcombine.high %v19, %v19
    %v187 = vsub.f32 %v18, %v185
    %vm188 = vcmp.eq.s32.totalorder %v23, 2
    %v189 = vsel %vm188, 1, 0
    %v190 = vcvt.s32.f32 %v189
    %v191 = vmul.f32 %v187, %v187
    %v193 = vsel %vm38, %v191, 0
    %195 = vmatprep.subr.mxu0 0.0
    %196 = vmatpush1.msra.mxu0 0.0
    %197 = vmatprep.subr.mxu0 0.0
    %198 = vmatpush1.msra.mxu0 0.0
    %199 = vmatprep.subr.mxu0 0.0
    %200 = vmatpush1.msra.mxu0 0.0
    %201 = vmatprep.subr.mxu0 0.0
    %202 = vmatpush1.msra.mxu0 0.0
    %203 = vmatprep.subr.mxu0 0.0
    %204 = vmatpush1.msra.mxu0 0.0
    %205 = vmatprep.subr.mxu0 0.0
    %206 = vmatpush1.msra.mxu0 0.0
    %207 = vmatprep.subr.mxu0 0.0
    %208 = vmatpush1.msra.mxu0 0.0
    %209 = vmatprep.subr.mxu0 0.0
    %210 = vmatpush1.msra.mxu0 0.0
    %211 = vmatprep.subr.mxu0 0.0
    %212 = vmatpush1.msra.mxu0 %v190
    %213 = vmatprep.subr.mxu0 0.0
    %214 = vmatpush1.msra.mxu0 %v190
    %215 = vmatprep.subr.mxu0 0.0
    %216 = vmatpush1.msra.mxu0 %v190
    %217 = vmatprep.subr.mxu0 0.0
    %218 = vmatpush1.msra.mxu0 %v190
    %219 = vmatprep.subr.mxu0 0.0
    %220 = vmatpush1.msra.mxu0 %v190
    %221 = vmatprep.subr.mxu0 0.0
    %222 = vmatpush1.msra.mxu0 %v190
    %223 = vmatprep.subr.mxu0 0.0
    %224 = vmatpush1.msra.mxu0 %v190
    %225 = vmatprep.subr.mxu0 0.0
    %226 = vmatpush1.msra.mxu0 %v190
    %227 = vmatprep.subr.mxu0 0.0
    %228 = vmatpush2.msra.mxu0 0.0
    %229 = vmatprep.subr.mxu0 0.0
    %230 = vmatpush2.msra.mxu0 0.0
    %231 = vmatprep.subr.mxu0 0.0
    %232 = vmatpush2.msra.mxu0 0.0
    %233 = vmatprep.subr.mxu0 0.0
    %234 = vmatpush2.msra.mxu0 0.0
    %235 = vmatprep.subr.mxu0 0.0
    %236 = vmatpush2.msra.mxu0 0.0
    %237 = vmatprep.subr.mxu0 0.0
    %238 = vmatpush2.msra.mxu0 0.0
    %239 = vmatprep.subr.mxu0 0.0
    %240 = vmatpush2.msra.mxu0 0.0
    %241 = vmatprep.subr.mxu0 0.0
    %242 = vmatpush2.msra.mxu0 0.0
    %243 = vmatprep.subr.mxu0 0.0
    %244 = vmatpush2.msra.mxu0 0.0
    %245 = vmatprep.subr.mxu0 0.0
    %246 = vmatpush2.msra.mxu0 0.0
    %247 = vmatprep.subr.mxu0 0.0
    %248 = vmatpush2.msra.mxu0 0.0
    %249 = vmatprep.subr.mxu0 0.0
    %250 = vmatpush2.msra.mxu0 0.0
    %251 = vmatprep.subr.mxu0 0.0
    %252 = vmatpush2.msra.mxu0 0.0
    %253 = vmatprep.subr.mxu0 0.0
    %254 = vmatpush2.msra.mxu0 0.0
    %255 = vmatprep.subr.mxu0 0.0
    %256 = vmatpush2.msra.mxu0 0.0
    %257 = vmatprep.subr.mxu0 0.0
    %258 = vmatpush2.msra.mxu0 0.0
    %259 = vmatprep.mubr.f32.mxu0 0.0
    %260 = vmatmul.mubr.f32.gmra.mxu0 %v193
    %v261 = vpop.f32.mrf.mxu0
    %v262 = vadd.f32 0.0, %v261
    %v263 = vpop.f32.mrf.mxu0
    %264 = vdwg.mxu0
    %v265 = vadd.f32 %v182, %v262
    %266 = vrot.lane.b32.xlu0 %v185, 64
    %v267 = vpop.permute.xlu0 %266
    %v269 = vsub.f32 %v18, %v267
    %vm270 = vcmp.eq.s32.totalorder %v23, 3
    %v271 = vsel %vm270, 1, 0
    %v272 = vcvt.s32.f32 %v271
    %v273 = vmul.f32 %v269, %v269
    %v275 = vsel %vm38, %v273, 0
    %277 = vmatprep.subr.mxu0 0.0
    %278 = vmatpush1.msra.mxu0 0.0
    %279 = vmatprep.subr.mxu0 0.0
    %280 = vmatpush1.msra.mxu0 0.0
    %281 = vmatprep.subr.mxu0 0.0
    %282 = vmatpush1.msra.mxu0 0.0
    %283 = vmatprep.subr.mxu0 0.0
    %284 = vmatpush1.msra.mxu0 0.0
    %285 = vmatprep.subr.mxu0 0.0
    %286 = vmatpush1.msra.mxu0 0.0
    %287 = vmatprep.subr.mxu0 0.0
    %288 = vmatpush1.msra.mxu0 0.0
    %289 = vmatprep.subr.mxu0 0.0
    %290 = vmatpush1.msra.mxu0 0.0
    %291 = vmatprep.subr.mxu0 0.0
    %292 = vmatpush1.msra.mxu0 0.0
    %293 = vmatprep.subr.mxu0 0.0
    %294 = vmatpush1.msra.mxu0 %v272
    %295 = vmatprep.subr.mxu0 0.0
    %296 = vmatpush1.msra.mxu0 %v272
    %297 = vmatprep.subr.mxu0 0.0
    %298 = vmatpush1.msra.mxu0 %v272
    %299 = vmatprep.subr.mxu0 0.0
    %300 = vmatpush1.msra.mxu0 %v272
    %301 = vmatprep.subr.mxu0 0.0
    %302 = vmatpush1.msra.mxu0 %v272
    %303 = vmatprep.subr.mxu0 0.0
    %304 = vmatpush1.msra.mxu0 %v272
    %305 = vmatprep.subr.mxu0 0.0
    %306 = vmatpush1.msra.mxu0 %v272
    %307 = vmatprep.subr.mxu0 0.0
    %308 = vmatpush1.msra.mxu0 %v272
    %309 = vmatprep.subr.mxu0 0.0
    %310 = vmatpush2.msra.mxu0 0.0
    %311 = vmatprep.subr.mxu0 0.0
    %312 = vmatpush2.msra.mxu0 0.0
    %313 = vmatprep.subr.mxu0 0.0
    %314 = vmatpush2.msra.mxu0 0.0
    %315 = vmatprep.subr.mxu0 0.0
    %316 = vmatpush2.msra.mxu0 0.0
    %317 = vmatprep.subr.mxu0 0.0
    %318 = vmatpush2.msra.mxu0 0.0
    %319 = vmatprep.subr.mxu0 0.0
    %320 = vmatpush2.msra.mxu0 0.0
    %321 = vmatprep.subr.mxu0 0.0
    %322 = vmatpush2.msra.mxu0 0.0
    %323 = vmatprep.subr.mxu0 0.0
    %324 = vmatpush2.msra.mxu0 0.0
    %325 = vmatprep.subr.mxu0 0.0
    %326 = vmatpush2.msra.mxu0 0.0
    %327 = vmatprep.subr.mxu0 0.0
    %328 = vmatpush2.msra.mxu0 0.0
    %329 = vmatprep.subr.mxu0 0.0
    %330 = vmatpush2.msra.mxu0 0.0
    %331 = vmatprep.subr.mxu0 0.0
    %332 = vmatpush2.msra.mxu0 0.0
    %333 = vmatprep.subr.mxu0 0.0
    %334 = vmatpush2.msra.mxu0 0.0
    %335 = vmatprep.subr.mxu0 0.0
    %336 = vmatpush2.msra.mxu0 0.0
    %337 = vmatprep.subr.mxu0 0.0
    %338 = vmatpush2.msra.mxu0 0.0
    %339 = vmatprep.subr.mxu0 0.0
    %340 = vmatpush2.msra.mxu0 0.0
    %341 = vmatprep.mubr.f32.mxu0 0.0
    %342 = vmatmul.mubr.f32.gmra.mxu0 %v275
    %v343 = vpop.f32.mrf.mxu0
    %v344 = vadd.f32 0.0, %v343
    %v345 = vpop.f32.mrf.mxu0
    %346 = vdwg.mxu0
    %v347 = vadd.f32 %v265, %v344
    %v348 = vsub.f32 %v18, %v20
    %vm349 = vcmp.eq.s32.totalorder %v23, 4
    %v350 = vsel %vm349, 1, 0
    %v351 = vcvt.s32.f32 %v350
    %v352 = vmul.f32 %v348, %v348
    %v354 = vsel %vm38, %v352, 0
    %356 = vmatprep.subr.mxu0 0.0
    %357 = vmatpush1.msra.mxu0 0.0
    %358 = vmatprep.subr.mxu0 0.0
    %359 = vmatpush1.msra.mxu0 0.0
    %360 = vmatprep.subr.mxu0 0.0
    %361 = vmatpush1.msra.mxu0 0.0
    %362 = vmatprep.subr.mxu0 0.0
    %363 = vmatpush1.msra.mxu0 0.0
    %364 = vmatprep.subr.mxu0 0.0
    %365 = vmatpush1.msra.mxu0 0.0
    %366 = vmatprep.subr.mxu0 0.0
    %367 = vmatpush1.msra.mxu0 0.0
    %368 = vmatprep.subr.mxu0 0.0
    %369 = vmatpush1.msra.mxu0 0.0
    %370 = vmatprep.subr.mxu0 0.0
    %371 = vmatpush1.msra.mxu0 0.0
    %372 = vmatprep.subr.mxu0 0.0
    %373 = vmatpush1.msra.mxu0 %v351
    %374 = vmatprep.subr.mxu0 0.0
    %375 = vmatpush1.msra.mxu0 %v351
    %376 = vmatprep.subr.mxu0 0.0
    %377 = vmatpush1.msra.mxu0 %v351
    %378 = vmatprep.subr.mxu0 0.0
    %379 = vmatpush1.msra.mxu0 %v351
    %380 = vmatprep.subr.mxu0 0.0
    %381 = vmatpush1.msra.mxu0 %v351
    %382 = vmatprep.subr.mxu0 0.0
    %383 = vmatpush1.msra.mxu0 %v351
    %384 = vmatprep.subr.mxu0 0.0
    %385 = vmatpush1.msra.mxu0 %v351
    %386 = vmatprep.subr.mxu0 0.0
    %387 = vmatpush1.msra.mxu0 %v351
    %388 = vmatprep.subr.mxu0 0.0
    %389 = vmatpush2.msra.mxu0 0.0
    %390 = vmatprep.subr.mxu0 0.0
    %391 = vmatpush2.msra.mxu0 0.0
    %392 = vmatprep.subr.mxu0 0.0
    %393 = vmatpush2.msra.mxu0 0.0
    %394 = vmatprep.subr.mxu0 0.0
    %395 = vmatpush2.msra.mxu0 0.0
    %396 = vmatprep.subr.mxu0 0.0
    %397 = vmatpush2.msra.mxu0 0.0
    %398 = vmatprep.subr.mxu0 0.0
    %399 = vmatpush2.msra.mxu0 0.0
    %400 = vmatprep.subr.mxu0 0.0
    %401 = vmatpush2.msra.mxu0 0.0
    %402 = vmatprep.subr.mxu0 0.0
    %403 = vmatpush2.msra.mxu0 0.0
    %404 = vmatprep.subr.mxu0 0.0
    %405 = vmatpush2.msra.mxu0 0.0
    %406 = vmatprep.subr.mxu0 0.0
    %407 = vmatpush2.msra.mxu0 0.0
    %408 = vmatprep.subr.mxu0 0.0
    %409 = vmatpush2.msra.mxu0 0.0
    %410 = vmatprep.subr.mxu0 0.0
    %411 = vmatpush2.msra.mxu0 0.0
    %412 = vmatprep.subr.mxu0 0.0
    %413 = vmatpush2.msra.mxu0 0.0
    %414 = vmatprep.subr.mxu0 0.0
    %415 = vmatpush2.msra.mxu0 0.0
    %416 = vmatprep.subr.mxu0 0.0
    %417 = vmatpush2.msra.mxu0 0.0
    %418 = vmatprep.subr.mxu0 0.0
    %419 = vmatpush2.msra.mxu0 0.0
    %420 = vmatprep.mubr.f32.mxu0 0.0
    %421 = vmatmul.mubr.f32.gmra.mxu0 %v354
    %v422 = vpop.f32.mrf.mxu0
    %v423 = vadd.f32 0.0, %v422
    %v424 = vpop.f32.mrf.mxu0
    %425 = vdwg.mxu0
    %v426 = vadd.f32 %v347, %v423
    %v427 = vlaneseq
    %v428 = vshrl.u32 %v427, 7
    %vm429 = vcmask 35840
    %v430 = vsel %vm429, %v426, inf
    %431 = vmin.xlane.f32.xlu0 %v430
    %v432 = vpop.xlane.xlu0 %431
    %v433 = vsub.f32 %v432, %v426
    %v434 = vmul.f32 %v433, 1.442695
    %v435 = vpow.pop %v434
    %v436 = vsel %vm429, %v435, 0.0
    %437 = vadd.xlane.f32.xlu0 %v436
    %v438 = vpop.xlane.xlu0 %437
    %439 = vset.pattern.permute.xlu0 0
    %440 = vperm.xlu0 %439, %v21
    %v441 = vpop.permute.xlu0 %440
    %vm442 = vcmp.eq.s32.totalorder %v23, %v441
    %v443 = vsel %vm442, %v426, 0.0
    %v444 = vsel %vm429, %v443, 0.0
    %445 = vadd.xlane.f32.xlu0 %v444
    %v446 = vpop.xlane.xlu0 %445
    %v447 = vsub.f32 %v446, %v432
    %v448 = vlog2.pop %v438
    %v449 = vmul.f32 %v448, 0.6931472
    %v450 = vadd.f32 %v447, %v449
    %vm451 = vcmp.eq.f32.partialorder %v426, %v432
    %v452 = vsel %vm451, %v23, 1073741824
    %v453 = vsel %vm429, %v452, 2147483647
    %v454 = vand.u32 %v453, 65535
    %v455 = vshra.s32 %v453, 16
    %v456 = vcvt.s32.f32 %v454
    %v457 = vcvt.s32.f32 %v455
    %458 = vmin.xlane.f32.xlu0 %v457
    %v459 = vpop.xlane.xlu0 %458
    %vm460 = vcmp.eq.f32.partialorder %v457, %v459
    %v461 = vsel %vm460, %v456, inf
    %462 = vmin.xlane.f32.xlu0 %v461
    %v463 = vpop.xlane.xlu0 %462
    %v464 = vcvt.f32.s32 %v463
    %v465 = vcvt.f32.s32 %v459
    %v466 = vshll.u32 %v465, 16
    %v467 = vadd.s32 %v466, %v464
    %vm468 = vcmp.eq.s32.totalorder %v467, %v21
    %s469 = smul.u32 0, 4
    %v470 = vstv %s469
    %v471 = vadd.s32 %v428, %v470
    %vm472 = vcmp.lt.s32.totalorder %v471, 4
    %v473 = vsel %vm472, %v450, 0.0
    %vm474 = vcmask 3072
    %v475 = vsel %vm474, %v473, 0.0
    %476 = vadd.xlane.f32.xlu0 %v475
    %v477 = vpop.xlane.xlu0 %476
    %v478 = vrot.slane %v477, 4
    %v479 = vadd.f32 %v477, %v478
    %v480 = vrot.slane %v479, 2
    %v481 = vadd.f32 %v479, %v480
    %v482 = vrot.slane %v481, 1
    %v483 = vadd.f32 %v481, %v482
    %s484 = vtos %v483
    %s485 = scalar_lea.smem [#allocation2], 0
    %486 = sst [smem:[%s485]] %s484
    %vm487 = vmand %vm472, %vm468
    %v488 = vsel %vm487, 1.0, 0.0
    %v489 = vsel %vm474, %v488, 0.0
    %490 = vadd.xlane.f32.xlu0 %v489
    %v491 = vpop.xlane.xlu0 %490
    %v492 = vrot.slane %v491, 4
    %v493 = vadd.f32 %v491, %v492
    %v494 = vrot.slane %v493, 2
    %v495 = vadd.f32 %v493, %v494
    %v496 = vrot.slane %v495, 1
    %v497 = vadd.f32 %v495, %v496
    %s498 = vtos %v497
    %s499 = scalar_lea.smem [#allocation4], 0
    %500 = sst [smem:[%s499]] %s498
    // Predicated region
    $region14: #{prototypical_loss.1} parent=1 // pred_check
      _
    $region15: #{prototypical_loss.1} parent=1 // pred_check_branch
      %502 = sbr.rel (0) target = $region17
    $region16: #{prototypical_loss.1} parent=1 // pred_region
      %s504 = ssub.s32 16, 16
      %505 = vsyncadd [#allocation3], %s504
      %508 = dma.smem_to_hbm [#allocation2], 16, %s3, [#allocation3]
    $region17: #{prototypical_loss.1} parent=1 // pred_fallthru
      _
    // Predicated region
    $region18: #{prototypical_loss.1} parent=1 // pred_check
      _
    $region19: #{prototypical_loss.1} parent=1 // pred_check_branch
      %510 = sbr.rel (0) target = $region21
    $region20: #{prototypical_loss.1} parent=1 // pred_region
      %s512 = ssub.s32 16, 16
      %513 = vsyncadd [#allocation5], %s512
      %516 = dma.smem_to_hbm [#allocation4], 16, %s4, [#allocation5]
    $region21: #{prototypical_loss.1} parent=1 // pred_fallthru
      _
    // Predicated region
    $region22: #{prototypical_loss.1} parent=1 // pred_check
      _
    $region23: #{prototypical_loss.1} parent=1 // pred_check_branch
      %518 = sbr.rel (0) target = $region25
    $region24: #{prototypical_loss.1} parent=1 // pred_region
      %519 = dma.done [#allocation3], 16
    $region25: #{prototypical_loss.1} parent=1 // pred_fallthru
      _
    // Predicated region
    $region26: #{prototypical_loss.1} parent=1 // pred_check
      _
    $region27: #{prototypical_loss.1} parent=1 // pred_check_branch
      %521 = sbr.rel (0) target = $region29
    $region28: #{prototypical_loss.1} parent=1 // pred_region
      %522 = dma.done [#allocation5], 16
    $region29: #{prototypical_loss.1} parent=1 // pred_fallthru
      _
    %523 = sfence
    %524 = vsyncpa [#allocation3], 1
    %525 = vsyncpa [#allocation5], 1

</llo_original>
